<compile_context>
chip_gen: v6e
topology: v6e:2x2x1
jax: 0.10.0
libtpu: 0.0.40
codegen_flags: <defaults>
</compile_context>

<pallas_src>
import functools

import jax
import jax.numpy as jnp
import numpy as np
from jax.experimental import pallas as pl
from jax.experimental.pallas import tpu as pltpu


def _shift_kernel(shift_ref, x_ref, o_ref, *, pad, n_images):
    """Clamped integer shift of a block of images.

    shift_ref: SMEM int32 (2*n,)   flattened [sx_0, sy_0, sx_1, sy_1, ...]
    x_ref    : VMEM (bb, C, H, W)
    o_ref    : VMEM (bb, C, H, W)
    """
    bb, C, H, W = x_ref.shape
    dtype = x_ref.dtype
    blk = pl.program_id(0)

    # Index planes for the one-hot selection matrices (hoisted out of the loop).
    row_i = jax.lax.broadcasted_iota(jnp.int32, (H, H), 0)   # output row i
    row_k = jax.lax.broadcasted_iota(jnp.int32, (H, H), 1)   # source row k
    col_k = jax.lax.broadcasted_iota(jnp.int32, (W, W), 0)   # source col k
    col_j = jax.lax.broadcasted_iota(jnp.int32, (W, W), 1)   # output col j

    def body(b, carry):
        # Clamp so the ragged last block never reads shift_ref out of range
        # (its computed rows are dropped by the masked block writeback anyway).
        img = jnp.minimum(blk * bb + b, n_images - 1)
        dx = shift_ref[2 * img] - pad          # in [-pad, pad]
        dy = shift_ref[2 * img + 1] - pad

        # Sy[i, k]  = 1  iff  k == clamp(i + dy, 0, H-1)
        sy = (row_k == jnp.clip(row_i + dy, 0, H - 1)).astype(dtype)
        # SxT[k, j] = 1  iff  k == clamp(j + dx, 0, W-1)
        sxT = (col_k == jnp.clip(col_j + dx, 0, W - 1)).astype(dtype)

        # Per-channel fused column+row shift on a clean (H, W) slab: no big
        # intermediate, no slicing across sublane-tile boundaries. One-hot
        # matmuls are exact copies; accumulate in f32, cast to the out dtype.
        for ch in range(C):                    # static; C is small
            slab = x_ref[b, ch]                # (H, W)
            t = jnp.dot(slab, sxT, preferred_element_type=jnp.float32)
            o_ref[b, ch] = jnp.dot(
                sy, t.astype(dtype), preferred_element_type=jnp.float32
            ).astype(o_ref.dtype)
        return carry

    jax.lax.fori_loop(0, bb, body, 0)


def _pick_image_block(n_images, bytes_per_image, *, block_budget_bytes=4 << 20):
    """Images per grid step. ~4 MiB blocks so the double-buffered in+out
    footprint (~4x block) stays well inside the explicit VMEM limit on every
    generation, while being large enough to sit near the HBM roofline and
    amortise the ~0.35us per-grid-step overhead. bb need not divide n."""
    bb = block_budget_bytes // max(1, bytes_per_image)
    return int(max(1, min(n_images, bb)))


@functools.partial(jax.jit, static_argnames=("pad",))
def random_shifts_aug(x, shift_int, pad):
    """x: (n, c, h, w) float NCHW; shift_int: (n, 2) int32 in [0, 2*pad]."""
    n, c, h, w = x.shape
    if h != w:
        raise ValueError(f"RandomShiftsAug requires square images, got h={h}, w={w}")
    dtype = x.dtype

    # NOTE: shift_int must lie in [0, 2*pad]; out-of-range shifts would be
    # clamped (replicate) by this kernel but zeroed by grid_sample's zeros
    # padding in the original module.
    shift_flat = shift_int.astype(jnp.int32).reshape(-1)      # (2n,) -> SMEM

    bytes_per_image = c * h * w * x.dtype.itemsize
    bb = _pick_image_block(n, bytes_per_image)
    block_bytes = bb * bytes_per_image
    # Double-buffered in + out blocks ~= 4x block; add headroom, stay within
    # the smallest physical VMEM (v7x: 64 MiB per TensorCore).
    vmem_limit = int(min(112 << 20, max(32 << 20, 5 * block_bytes)))

    kernel = functools.partial(_shift_kernel, pad=pad, n_images=n)
    out = pl.pallas_call(
        kernel,
        out_shape=jax.ShapeDtypeStruct((n, c, h, w), dtype),
        grid_spec=pltpu.PrefetchScalarGridSpec(
            num_scalar_prefetch=1,
            grid=(pl.cdiv(n, bb),),                      # bb need not divide n
            in_specs=[pl.BlockSpec((bb, c, h, w), lambda i, s: (i, 0, 0, 0))],
            out_specs=pl.BlockSpec((bb, c, h, w), lambda i, s: (i, 0, 0, 0)),
        ),
        compiler_params=pltpu.CompilerParams(
            dimension_semantics=("parallel",),
            vmem_limit_bytes=vmem_limit,
        ),
    )(shift_flat, x)
    return out


# ----------------------------------------------------------------------------
# Reference: the exact PyTorch formula (replicate pad + bilinear grid_sample
# with zeros padding) written in plain JAX.
# ----------------------------------------------------------------------------
def _build_selection(coord, size, dtype):
    """Bilinear selection weights S[b, j, k]: weight of padded index k for
    output position j, with zeros padding outside [0, size)."""
    i0 = jnp.floor(coord)
    frac = coord - i0
    i0 = i0.astype(jnp.int32)
    i1 = i0 + 1
    w0 = jnp.where((i0 >= 0) & (i0 < size), 1.0 - frac, 0.0).astype(dtype)
    w1 = jnp.where((i1 >= 0) & (i1 < size), frac, 0.0).astype(dtype)
    idx = jnp.arange(size)
    oh0 = (i0[..., None] == idx).astype(dtype)
    oh1 = (i1[..., None] == idx).astype(dtype)
    return oh0 * w0[..., None] + oh1 * w1[..., None]


def _reference(x, shift_int, pad):
    n, c, h, w = x.shape
    hp, wp = h + 2 * pad, w + 2 * pad
    xp = jnp.pad(x, ((0, 0), (0, 0), (pad, pad), (pad, pad)), mode="edge")
    eps = 1.0 / hp
    arange = jnp.linspace(-1.0 + eps, 1.0 - eps, hp, dtype=x.dtype)[:h]
    shift = shift_int.astype(x.dtype) * (2.0 / hp)
    gx = arange[None, :] + shift[:, 0:1]           # x / width coordinate
    gy = arange[None, :] + shift[:, 1:2]           # y / height coordinate
    ix = ((gx + 1.0) * wp - 1.0) * 0.5             # unnormalize with wp
    iy = ((gy + 1.0) * hp - 1.0) * 0.5             # unnormalize with hp
    sy = _build_selection(iy, hp, x.dtype)         # (n, h, hp)
    sx = _build_selection(ix, wp, x.dtype)         # (n, w, wp)
    return jnp.einsum("bik,bckl,bjl->bcij", sy, xp, sx)


if __name__ == "__main__":
    key = jax.random.PRNGKey(0)
    k_x, k_shift = jax.random.split(key)

    pad = 4
    n, c, h, w = 2, 4, 16, 16
    x = jax.random.normal(k_x, (n, c, h, w), dtype=jnp.float32)

    # TODO(synk): torch.randint RNG stream cannot be reproduced; draw the same
    # distribution (integers in [0, 2*pad]) with jax.random instead.
    shift_int = jax.random.randint(k_shift, (n, 2), 0, 2 * pad + 1,
                                   dtype=jnp.int32)

    out = jax.block_until_ready(random_shifts_aug(x, shift_int, pad))
    ref = _reference(x, shift_int, pad)

    assert out.shape == x.shape and out.dtype == x.dtype
    np.testing.assert_allclose(np.asarray(out), np.asarray(ref),
                               rtol=1e-4, atol=1e-4)
    print("KERNEL_OK")
</pallas_src>

<mosaic_0001>
module attributes {stable_mosaic.version = 11 : i64} {
  func.func @_shift_kernel(%arg0: i32, %arg1: memref<4xi32, #tpu.memory_space<smem>>, %arg2: memref<2x4x16x16xf32, #tpu.memory_space<vmem>>, %arg3: memref<2x4x16x16xf32, #tpu.memory_space<vmem>>) attributes {dimension_semantics = [#tpu.dimension_semantics<parallel>], iteration_bounds = array<i64: 1>, scalar_prefetch = 1 : i64, scratch_operands = 0 : i64, tpu.core_type = #tpu.core_type<tc>, window_params = [{transform_indices = @transform_0, window_bounds = array<i64: 2, 4, 16, 16>}, {transform_indices = @transform_1, window_bounds = array<i64: 2, 4, 16, 16>}]} {
    %0 = tpu.iota {dimensions = array<i32: 0>} : vector<16x16xi32>
    %1 = tpu.iota {dimensions = array<i32: 1>} : vector<16x16xi32>
    %2 = tpu.iota {dimensions = array<i32: 0>} : vector<16x16xi32>
    %3 = tpu.iota {dimensions = array<i32: 1>} : vector<16x16xi32>
    %c0_i32 = arith.constant 0 : i32
    %c2_i32 = arith.constant 2 : i32
    %4 = arith.addi %c0_i32, %c2_i32 : i32
    %c1_i32 = arith.constant 1 : i32
    scf.for %arg4 = %c0_i32 to %4 step %c1_i32  : i32 {
      %c2_i32_1 = arith.constant 2 : i32
      %5 = arith.muli %arg0, %c2_i32_1 : i32
      %6 = arith.addi %5, %arg4 : i32
      %c1_i32_2 = arith.constant 1 : i32
      %7 = arith.minsi %6, %c1_i32_2 : i32
      %c2_i32_3 = arith.constant 2 : i32
      %8 = arith.muli %c2_i32_3, %7 : i32
      %9 = arith.index_cast %8 : i32 to index
      %10 = memref.load %arg1[%9] : memref<4xi32, #tpu.memory_space<smem>>
      %c4_i32 = arith.constant 4 : i32
      %11 = arith.subi %10, %c4_i32 : i32
      %c2_i32_4 = arith.constant 2 : i32
      %12 = arith.muli %c2_i32_4, %7 : i32
      %c1_i32_5 = arith.constant 1 : i32
      %13 = arith.addi %12, %c1_i32_5 : i32
      %14 = arith.index_cast %13 : i32 to index
      %15 = memref.load %arg1[%14] : memref<4xi32, #tpu.memory_space<smem>>
      %c4_i32_6 = arith.constant 4 : i32
      %16 = arith.subi %15, %c4_i32_6 : i32
      %17 = vector.broadcast %16 : i32 to vector<16x16xi32>
      %18 = arith.addi %0, %17 : vector<16x16xi32>
      %c0_i32_7 = arith.constant 0 : i32
      %c15_i32 = arith.constant 15 : i32
      %19 = vector.broadcast %c0_i32_7 : i32 to vector<16x16xi32>
      %20 = arith.maxsi %19, %18 : vector<16x16xi32>
      %21 = vector.broadcast %c15_i32 : i32 to vector<16x16xi32>
      %22 = arith.minsi %21, %20 : vector<16x16xi32>
      %23 = arith.cmpi eq, %1, %22 : vector<16x16xi32>
      %24 = arith.extui %23 : vector<16x16xi1> to vector<16x16xi32>
      %25 = arith.sitofp %24 : vector<16x16xi32> to vector<16x16xf32>
      %26 = vector.broadcast %11 : i32 to vector<16x16xi32>
      %27 = arith.addi %3, %26 : vector<16x16xi32>
      %c0_i32_8 = arith.constant 0 : i32
      %c15_i32_9 = arith.constant 15 : i32
      %28 = vector.broadcast %c0_i32_8 : i32 to vector<16x16xi32>
      %29 = arith.maxsi %28, %27 : vector<16x16xi32>
      %30 = vector.broadcast %c15_i32_9 : i32 to vector<16x16xi32>
      %31 = arith.minsi %30, %29 : vector<16x16xi32>
      %32 = arith.cmpi eq, %2, %31 : vector<16x16xi32>
      %33 = arith.extui %32 : vector<16x16xi1> to vector<16x16xi32>
      %34 = arith.sitofp %33 : vector<16x16xi32> to vector<16x16xf32>
      %35 = arith.index_cast %arg4 : i32 to index
      %c0 = arith.constant 0 : index
      %c0_10 = arith.constant 0 : index
      %c0_11 = arith.constant 0 : index
      %36 = vector.load %arg2[%35, %c0, %c0_10, %c0_11] : memref<2x4x16x16xf32, #tpu.memory_space<vmem>>, vector<1x1x16x16xf32>
      %37 = vector.shape_cast %36 : vector<1x1x16x16xf32> to vector<16x16xf32>
      %cst = arith.constant dense<0.000000e+00> : vector<16x16xf32>
      %38 = tpu.matmul %37, %34, %cst {dimension_numbers = #tpu.dot_dimension_numbers<[1], [0], [0], [1], [0, 0, 1, 1], [], []>} : vector<16x16xf32>, vector<16x16xf32>, vector<16x16xf32> -> vector<16x16xf32>
      %cst_12 = arith.constant dense<0.000000e+00> : vector<16x16xf32>
      %39 = tpu.matmul %25, %38, %cst_12 {dimension_numbers = #tpu.dot_dimension_numbers<[1], [0], [0], [1], [0, 0, 1, 1], [], []>} : vector<16x16xf32>, vector<16x16xf32>, vector<16x16xf32> -> vector<16x16xf32>
      %40 = arith.index_cast %arg4 : i32 to index
      %c0_13 = arith.constant 0 : index
      %c0_14 = arith.constant 0 : index
      %c0_15 = arith.constant 0 : index
      %41 = vector.load %arg3[%40, %c0_13, %c0_14, %c0_15] : memref<2x4x16x16xf32, #tpu.memory_space<vmem>>, vector<1x1x16x16xf32>
      %42 = vector.shape_cast %41 : vector<1x1x16x16xf32> to vector<16x16xf32>
      %43 = vector.shape_cast %39 : vector<16x16xf32> to vector<1x1x16x16xf32>
      tpu.vector_store %arg3[%40, %c0_13, %c0_14, %c0_15], %43 {strides = array<i32>} : memref<2x4x16x16xf32, #tpu.memory_space<vmem>>, vector<1x1x16x16xf32>,
      %44 = arith.index_cast %arg4 : i32 to index
      %c1 = arith.constant 1 : index
      %c0_16 = arith.constant 0 : index
      %c0_17 = arith.constant 0 : index
      %45 = vector.load %arg2[%44, %c1, %c0_16, %c0_17] : memref<2x4x16x16xf32, #tpu.memory_space<vmem>>, vector<1x1x16x16xf32>
      %46 = vector.shape_cast %45 : vector<1x1x16x16xf32> to vector<16x16xf32>
      %cst_18 = arith.constant dense<0.000000e+00> : vector<16x16xf32>
      %47 = tpu.matmul %46, %34, %cst_18 {dimension_numbers = #tpu.dot_dimension_numbers<[1], [0], [0], [1], [0, 0, 1, 1], [], []>} : vector<16x16xf32>, vector<16x16xf32>, vector<16x16xf32> -> vector<16x16xf32>
      %cst_19 = arith.constant dense<0.000000e+00> : vector<16x16xf32>
      %48 = tpu.matmul %25, %47, %cst_19 {dimension_numbers = #tpu.dot_dimension_numbers<[1], [0], [0], [1], [0, 0, 1, 1], [], []>} : vector<16x16xf32>, vector<16x16xf32>, vector<16x16xf32> -> vector<16x16xf32>
      %49 = arith.index_cast %arg4 : i32 to index
      %c1_20 = arith.constant 1 : index
      %c0_21 = arith.constant 0 : index
      %c0_22 = arith.constant 0 : index
      %50 = vector.load %arg3[%49, %c1_20, %c0_21, %c0_22] : memref<2x4x16x16xf32, #tpu.memory_space<vmem>>, vector<1x1x16x16xf32>
      %51 = vector.shape_cast %50 : vector<1x1x16x16xf32> to vector<16x16xf32>
      %52 = vector.shape_cast %48 : vector<16x16xf32> to vector<1x1x16x16xf32>
      tpu.vector_store %arg3[%49, %c1_20, %c0_21, %c0_22], %52 {strides = array<i32>} : memref<2x4x16x16xf32, #tpu.memory_space<vmem>>, vector<1x1x16x16xf32>,
      %53 = arith.index_cast %arg4 : i32 to index
      %c2 = arith.constant 2 : index
      %c0_23 = arith.constant 0 : index
      %c0_24 = arith.constant 0 : index
      %54 = vector.load %arg2[%53, %c2, %c0_23, %c0_24] : memref<2x4x16x16xf32, #tpu.memory_space<vmem>>, vector<1x1x16x16xf32>
      %55 = vector.shape_cast %54 : vector<1x1x16x16xf32> to vector<16x16xf32>
      %cst_25 = arith.constant dense<0.000000e+00> : vector<16x16xf32>
      %56 = tpu.matmul %55, %34, %cst_25 {dimension_numbers = #tpu.dot_dimension_numbers<[1], [0], [0], [1], [0, 0, 1, 1], [], []>} : vector<16x16xf32>, vector<16x16xf32>, vector<16x16xf32> -> vector<16x16xf32>
      %cst_26 = arith.constant dense<0.000000e+00> : vector<16x16xf32>
      %57 = tpu.matmul %25, %56, %cst_26 {dimension_numbers = #tpu.dot_dimension_numbers<[1], [0], [0], [1], [0, 0, 1, 1], [], []>} : vector<16x16xf32>, vector<16x16xf32>, vector<16x16xf32> -> vector<16x16xf32>
      %58 = arith.index_cast %arg4 : i32 to index
      %c2_27 = arith.constant 2 : index
      %c0_28 = arith.constant 0 : index
      %c0_29 = arith.constant 0 : index
      %59 = vector.load %arg3[%58, %c2_27, %c0_28, %c0_29] : memref<2x4x16x16xf32, #tpu.memory_space<vmem>>, vector<1x1x16x16xf32>
      %60 = vector.shape_cast %59 : vector<1x1x16x16xf32> to vector<16x16xf32>
      %61 = vector.shape_cast %57 : vector<16x16xf32> to vector<1x1x16x16xf32>
      tpu.vector_store %arg3[%58, %c2_27, %c0_28, %c0_29], %61 {strides = array<i32>} : memref<2x4x16x16xf32, #tpu.memory_space<vmem>>, vector<1x1x16x16xf32>,
      %62 = arith.index_cast %arg4 : i32 to index
      %c3 = arith.constant 3 : index
      %c0_30 = arith.constant 0 : index
      %c0_31 = arith.constant 0 : index
      %63 = vector.load %arg2[%62, %c3, %c0_30, %c0_31] : memref<2x4x16x16xf32, #tpu.memory_space<vmem>>, vector<1x1x16x16xf32>
      %64 = vector.shape_cast %63 : vector<1x1x16x16xf32> to vector<16x16xf32>
      %cst_32 = arith.constant dense<0.000000e+00> : vector<16x16xf32>
      %65 = tpu.matmul %64, %34, %cst_32 {dimension_numbers = #tpu.dot_dimension_numbers<[1], [0], [0], [1], [0, 0, 1, 1], [], []>} : vector<16x16xf32>, vector<16x16xf32>, vector<16x16xf32> -> vector<16x16xf32>
      %cst_33 = arith.constant dense<0.000000e+00> : vector<16x16xf32>
      %66 = tpu.matmul %25, %65, %cst_33 {dimension_numbers = #tpu.dot_dimension_numbers<[1], [0], [0], [1], [0, 0, 1, 1], [], []>} : vector<16x16xf32>, vector<16x16xf32>, vector<16x16xf32> -> vector<16x16xf32>
      %67 = arith.index_cast %arg4 : i32 to index
      %c3_34 = arith.constant 3 : index
      %c0_35 = arith.constant 0 : index
      %c0_36 = arith.constant 0 : index
      %68 = vector.load %arg3[%67, %c3_34, %c0_35, %c0_36] : memref<2x4x16x16xf32, #tpu.memory_space<vmem>>, vector<1x1x16x16xf32>
      %69 = vector.shape_cast %68 : vector<1x1x16x16xf32> to vector<16x16xf32>
      %70 = vector.shape_cast %66 : vector<16x16xf32> to vector<1x1x16x16xf32>
      tpu.vector_store %arg3[%67, %c3_34, %c0_35, %c0_36], %70 {strides = array<i32>} : memref<2x4x16x16xf32, #tpu.memory_space<vmem>>, vector<1x1x16x16xf32>,
    }
    %c2_i32_0 = arith.constant 2 : i32
    return
  }
  func.func @transform_0(%arg0: i32, %arg1: memref<4xi32, #tpu.memory_space<smem>>) -> (i32, i32, i32, i32) {
    %c0_i32 = arith.constant 0 : i32
    %c0_i32_0 = arith.constant 0 : i32
    %c0_i32_1 = arith.constant 0 : i32
    %c0_i32_2 = arith.constant 0 : i32
    return %arg0, %c0_i32, %c0_i32_0, %c0_i32_1 : i32, i32, i32, i32
  }
  func.func @transform_1(%arg0: i32, %arg1: memref<4xi32, #tpu.memory_space<smem>>) -> (i32, i32, i32, i32) {
    %c0_i32 = arith.constant 0 : i32
    %c0_i32_0 = arith.constant 0 : i32
    %c0_i32_1 = arith.constant 0 : i32
    %c0_i32_2 = arith.constant 0 : i32
    return %arg0, %c0_i32, %c0_i32_0, %c0_i32_1 : i32, i32, i32, i32
  }
}

</mosaic_0001>

<llo_original>
// kernel: random_shifts_aug.1
$region0: #{random_shifts_aug.1}
  #allocation0 [shape = 'u32[]', space=smem, size = 0x4, offset = 0x4, fixed_abs, tag = 'smem constant byte address 0x4 - core index']
  #allocation1 [shape = 'u32[144,128]{1,0:T(1,128)}', space=vmem, size = 0x12000, scoped, tag = 'internal scratch']
  #allocation2 [shape = 's32[1]{0}', space=sflag, size = 0x4, scoped, tag = 'scoped memory for random_shifts_aug.1']
  #allocation3 [shape = 'u8[512]{0}', space=smem, size = 0x200, scoped, tag = 'prefetched SMEM operand 0']
  %s0 = inlined_call_operand.vmem [shape: s32[4], index: 0, kind: input, shape index: {}]
  %s1 = inlined_call_operand.hbm [shape: f32[2,4,16,16], index: 1, kind: input, shape index: {}]
  %s2 = inlined_call_operand.hbm [shape: f32[2,4,16,16], index: 2, kind: output, shape index: {}]
  %s3 = sld [smem:[#allocation0]]
  $region25: #{random_shifts_aug.1} parent=0
    _
  %s5 = ssub.s32 1, %s3
  %s6 = scalar_select 0, %s5, %s3
  %s7 = sshll.u32 %s0, 4
  %s8 = int_to_ptr.vmem [resolvable:$true] %s7
  %10 = dma.vmem_to_smem %s8, 16, [#allocation3], [#allocation2]
  %11 = dma.done [#allocation2], 16
  %12 = sfence
  $region1: #{random_shifts_aug.1} parent=0
    #allocation4 [shape = 'u8[65536]{0}', space=vmem, size = 0x10000, scoped, tag = 'input window, operand 1, single buffered']
    #allocation5 [shape = 's32[1]{0}', space=sflag, size = 0x4, scoped, tag = 'scoped memory for random_shifts_aug.1']
    #allocation6 [shape = 's32[1]{0}', space=sflag, size = 0x4, scoped, tag = 'scoped memory for random_shifts_aug.1']
    #allocation7 [shape = 'u8[65536]{0}', space=vmem, size = 0x10000, scoped, tag = 'output window, operand 0, single buffered']
    %13 = vsyncpa [#allocation5], 0
    %14 = vsyncpa [#allocation6], 0
    // Predicated region
    $region2: #{random_shifts_aug.1} parent=1 // pred_check
      _
    $region3: #{random_shifts_aug.1} parent=1 // pred_check_branch
      %16 = sbr.rel (0) target = $region5
    $region4: #{random_shifts_aug.1} parent=1 // pred_region
      %s18 = ssub.s32 2048, 2048
      %19 = vsyncadd [#allocation5], %s18
      %s20 = sshll.u32 [#allocation4], 4
      %s21 = int_to_ptr.vmem [resolvable:$true] %s20
      %26 = dma.hbm_to_vmem [thread:$0]  %s1, 2048, %s21, [#allocation5], 128, 128, 8
    $region5: #{random_shifts_aug.1} parent=1 // pred_fallthru
      _
    // Predicated region
    $region6: #{random_shifts_aug.1} parent=1 // pred_check
      _
    $region7: #{random_shifts_aug.1} parent=1 // pred_check_branch
      %28 = sbr.rel (0) target = $region9
    $region8: #{random_shifts_aug.1} parent=1 // pred_region
      %29 = dma.done [#allocation5], 2048
    $region9: #{random_shifts_aug.1} parent=1 // pred_fallthru
      _
    %v30 = vlaneseq
    %v31 = vshrl.u32 %v30, 7
    %v32 = vadd.s32 %v31, 8
    %v33 = vlaneseq
    %v34 = vand.u32 %v33, 127
    loop: start=0, step=1, limit=2
    $region10: #{random_shifts_aug.1} parent=1 // loop_pre_header
      _
    $region11: #{random_shifts_aug.1} parent=1 // loop_header
      %s36 = sphi 0, %s40
      %p37 = scmp.ge.s32.totalorder %s36, 2
    $region12: #{random_shifts_aug.1} parent=1 // loop_header_branch
      %39 = sbr.rel (%p37) target = $region16
    $region13: #{random_shifts_aug.1} parent=1 // loop_body
      %s41 = smul.u32 0, 2
      %s42 = sadd.s32 %s41, %s36
      %p43 = scmp.lt.s32.totalorder %s42, 1
      %s44 = scalar_select %p43, %s42, 1
      %s45 = smul.u32 %s44, 2
      %s46 = sld [smem:[#allocation3 + %s45]]
      %s47 = ssub.s32 %s46, 4
      %s48 = sadd.s32 %s45, 1
      %s49 = sld [smem:[#allocation3 + %s48]]
      %s50 = ssub.s32 %s49, 4
      %v51 = vstv %s50
      %v52 = vadd.s32 %v31, %v51
      %v53 = vadd.s32 %v32, %v51
      %vm54 = vcmp.gt.s32.totalorder %v52, 0
      %v55 = vsel %vm54, %v52, 0
      %vm56 = vcmp.gt.s32.totalorder %v53, 0
      %v57 = vsel %vm56, %v53, 0
      %vm58 = vcmp.lt.s32.totalorder %v55, 15
      %v59 = vsel %vm58, %v55, 15
      %vm60 = vcmp.lt.s32.totalorder %v57, 15
      %v61 = vsel %vm60, %v57, 15
      %vm62 = vcmp.eq.s32.totalorder %v34, %v59
      %vm63 = vcmp.eq.s32.totalorder %v34, %v61
      %v64 = vsel %vm62, 1, 0
      %v65 = vsel %vm63, 1, 0
      %v66 = vcvt.s32.f32 %v64
      %v67 = vcvt.s32.f32 %v65
      %v68 = vstv %s47
      %v69 = vadd.s32 %v34, %v68
      %vm70 = vcmp.gt.s32.totalorder %v69, 0
      %v71 = vsel %vm70, %v69, 0
      %vm72 = vcmp.lt.s32.totalorder %v71, 15
      %v73 = vsel %vm72, %v71, 15
      %vm74 = vcmp.eq.s32.totalorder %v31, %v73
      %vm75 = vcmp.eq.s32.totalorder %v32, %v73
      %v76 = vsel %vm74, 1, 0
      %v77 = vsel %vm75, 1, 0
      %v78 = vcvt.s32.f32 %v76
      %v79 = vcvt.s32.f32 %v77
      %s80 = smul.u32 %s36, 64
      %s81 = scalar_lea.vmem [#allocation4], %s80
      %v82 = vld [vmem:[%s81] sm:$0xff]
      %v83 = vld [vmem:[%s81 + $0x8] sm:$0xff]
      %vm84 = vcmask 130048
      %v86 = vsel %vm84, %v82, 0
      %v89 = vsel %vm84, %v83, 0
      %91 = vmatprep.subr.mxu0 0.0
      %92 = vmatpush1.msra.mxu0 0.0
      %93 = vmatprep.subr.mxu0 0.0
      %94 = vmatpush1.msra.mxu0 0.0
      %95 = vmatprep.subr.mxu0 0.0
      %96 = vmatpush1.msra.mxu0 0.0
      %97 = vmatprep.subr.mxu0 0.0
      %98 = vmatpush1.msra.mxu0 0.0
      %99 = vmatprep.subr.mxu0 0.0
      %100 = vmatpush1.msra.mxu0 0.0
      %101 = vmatprep.subr.mxu0 0.0
      %102 = vmatpush1.msra.mxu0 0.0
      %103 = vmatprep.subr.mxu0 0.0
      %104 = vmatpush1.msra.mxu0 0.0
      %105 = vmatprep.subr.mxu0 0.0
      %106 = vmatpush1.msra.mxu0 0.0
      %107 = vmatprep.subr.mxu0 0.0
      %108 = vmatpush1.msra.mxu0 0.0
      %109 = vmatprep.subr.mxu0 0.0
      %110 = vmatpush1.msra.mxu0 0.0
      %111 = vmatprep.subr.mxu0 0.0
      %112 = vmatpush1.msra.mxu0 0.0
      %113 = vmatprep.subr.mxu0 0.0
      %114 = vmatpush1.msra.mxu0 0.0
      %115 = vmatprep.subr.mxu0 0.0
      %116 = vmatpush1.msra.mxu0 0.0
      %117 = vmatprep.subr.mxu0 0.0
      %118 = vmatpush1.msra.mxu0 0.0
      %119 = vmatprep.subr.mxu0 0.0
      %120 = vmatpush1.msra.mxu0 %v79
      %121 = vmatprep.subr.mxu0 0.0
      %122 = vmatpush1.msra.mxu0 %v78
      %123 = vmatprep.subr.mxu0 0.0
      %124 = vmatpush2.msra.mxu0 0.0
      %125 = vmatprep.subr.mxu0 0.0
      %126 = vmatpush2.msra.mxu0 0.0
      %127 = vmatprep.subr.mxu0 0.0
      %128 = vmatpush2.msra.mxu0 0.0
      %129 = vmatprep.subr.mxu0 0.0
      %130 = vmatpush2.msra.mxu0 0.0
      %131 = vmatprep.subr.mxu0 0.0
      %132 = vmatpush2.msra.mxu0 0.0
      %133 = vmatprep.subr.mxu0 0.0
      %134 = vmatpush2.msra.mxu0 0.0
      %135 = vmatprep.subr.mxu0 0.0
      %136 = vmatpush2.msra.mxu0 0.0
      %137 = vmatprep.subr.mxu0 0.0
      %138 = vmatpush2.msra.mxu0 0.0
      %139 = vmatprep.subr.mxu0 0.0
      %140 = vmatpush2.msra.mxu0 0.0
      %141 = vmatprep.subr.mxu0 0.0
      %142 = vmatpush2.msra.mxu0 0.0
      %143 = vmatprep.subr.mxu0 0.0
      %144 = vmatpush2.msra.mxu0 0.0
      %145 = vmatprep.subr.mxu0 0.0
      %146 = vmatpush2.msra.mxu0 0.0
      %147 = vmatprep.subr.mxu0 0.0
      %148 = vmatpush2.msra.mxu0 0.0
      %149 = vmatprep.subr.mxu0 0.0
      %150 = vmatpush2.msra.mxu0 0.0
      %151 = vmatprep.subr.mxu0 0.0
      %152 = vmatpush2.msra.mxu0 0.0
      %153 = vmatprep.subr.mxu0 0.0
      %154 = vmatpush2.msra.mxu0 0.0
      %155 = vmatprep.mubr.f32.mxu0 0.0
      %156 = vmatmul.mubr.f32.gmra.mxu0 %v86
      %v157 = vpop.f32.mrf.mxu0
      %v158 = vadd.f32 0.0, %v157
      %v159 = vpop.f32.mrf.mxu0
      %160 = vmatprep.mubr.f32.mxu0 0.0
      %161 = vmatmul.mubr.f32.gmra.mxu0 %v89
      %v162 = vpop.f32.mrf.mxu0
      %v163 = vadd.f32 0.0, %v162
      %v164 = vpop.f32.mrf.mxu0
      %165 = vdwg.mxu0
      %v167 = vsel %vm84, %v66, 0
      %v170 = vsel %vm84, %v67, 0
      %172 = vmatprep.subr.mxu0 0.0
      %173 = vmatpush1.msra.mxu0 0.0
      %174 = vmatprep.subr.mxu0 0.0
      %175 = vmatpush1.msra.mxu0 0.0
      %176 = vmatprep.subr.mxu0 0.0
      %177 = vmatpush1.msra.mxu0 0.0
      %178 = vmatprep.subr.mxu0 0.0
      %179 = vmatpush1.msra.mxu0 0.0
      %180 = vmatprep.subr.mxu0 0.0
      %181 = vmatpush1.msra.mxu0 0.0
      %182 = vmatprep.subr.mxu0 0.0
      %183 = vmatpush1.msra.mxu0 0.0
      %184 = vmatprep.subr.mxu0 0.0
      %185 = vmatpush1.msra.mxu0 0.0
      %186 = vmatprep.subr.mxu0 0.0
      %187 = vmatpush1.msra.mxu0 0.0
      %188 = vmatprep.subr.mxu0 0.0
      %189 = vmatpush1.msra.mxu0 0.0
      %190 = vmatprep.subr.mxu0 0.0
      %191 = vmatpush1.msra.mxu0 0.0
      %192 = vmatprep.subr.mxu0 0.0
      %193 = vmatpush1.msra.mxu0 0.0
      %194 = vmatprep.subr.mxu0 0.0
      %195 = vmatpush1.msra.mxu0 0.0
      %196 = vmatprep.subr.mxu0 0.0
      %197 = vmatpush1.msra.mxu0 0.0
      %198 = vmatprep.subr.mxu0 0.0
      %199 = vmatpush1.msra.mxu0 0.0
      %200 = vmatprep.subr.mxu0 0.0
      %201 = vmatpush1.msra.mxu0 %v163
      %202 = vmatprep.subr.mxu0 0.0
      %203 = vmatpush1.msra.mxu0 %v158
      %204 = vmatprep.subr.mxu0 0.0
      %205 = vmatpush2.msra.mxu0 0.0
      %206 = vmatprep.subr.mxu0 0.0
      %207 = vmatpush2.msra.mxu0 0.0
      %208 = vmatprep.subr.mxu0 0.0
      %209 = vmatpush2.msra.mxu0 0.0
      %210 = vmatprep.subr.mxu0 0.0
      %211 = vmatpush2.msra.mxu0 0.0
      %212 = vmatprep.subr.mxu0 0.0
      %213 = vmatpush2.msra.mxu0 0.0
      %214 = vmatprep.subr.mxu0 0.0
      %215 = vmatpush2.msra.mxu0 0.0
      %216 = vmatprep.subr.mxu0 0.0
      %217 = vmatpush2.msra.mxu0 0.0
      %218 = vmatprep.subr.mxu0 0.0
      %219 = vmatpush2.msra.mxu0 0.0
      %220 = vmatprep.subr.mxu0 0.0
      %221 = vmatpush2.msra.mxu0 0.0
      %222 = vmatprep.subr.mxu0 0.0
      %223 = vmatpush2.msra.mxu0 0.0
      %224 = vmatprep.subr.mxu0 0.0
      %225 = vmatpush2.msra.mxu0 0.0
      %226 = vmatprep.subr.mxu0 0.0
      %227 = vmatpush2.msra.mxu0 0.0
      %228 = vmatprep.subr.mxu0 0.0
      %229 = vmatpush2.msra.mxu0 0.0
      %230 = vmatprep.subr.mxu0 0.0
      %231 = vmatpush2.msra.mxu0 0.0
      %232 = vmatprep.subr.mxu0 0.0
      %233 = vmatpush2.msra.mxu0 0.0
      %234 = vmatprep.subr.mxu0 0.0
      %235 = vmatpush2.msra.mxu0 0.0
      %236 = vmatprep.mubr.f32.mxu0 0.0
      %237 = vmatmul.mubr.f32.gmra.mxu0 %v167
      %v238 = vpop.f32.mrf.mxu0
      %v239 = vadd.f32 0.0, %v238
      %v240 = vpop.f32.mrf.mxu0
      %241 = vmatprep.mubr.f32.mxu0 0.0
      %242 = vmatmul.mubr.f32.gmra.mxu0 %v170
      %v243 = vpop.f32.mrf.mxu0
      %v244 = vadd.f32 0.0, %v243
      %v245 = vpop.f32.mrf.mxu0
      %246 = vdwg.mxu0
      %s247 = scalar_lea.vmem [#allocation7], %s80
      %248 = vst.msk [vmem:[%s247] sm:$0xff] %vm84, %v239
      %249 = vst.msk [vmem:[%s247 + $0x8] sm:$0xff] %vm84, %v244
      %s250 = sadd.s32 16, %s80
      %s251 = scalar_lea.vmem [#allocation4], %s250
      %v252 = vld [vmem:[%s251] sm:$0xff]
      %v253 = vld [vmem:[%s251 + $0x8] sm:$0xff]
      %v255 = vsel %vm84, %v252, 0
      %v258 = vsel %vm84, %v253, 0
      %260 = vmatprep.subr.mxu0 0.0
      %261 = vmatpush1.msra.mxu0 0.0
      %262 = vmatprep.subr.mxu0 0.0
      %263 = vmatpush1.msra.mxu0 0.0
      %264 = vmatprep.subr.mxu0 0.0
      %265 = vmatpush1.msra.mxu0 0.0
      %266 = vmatprep.subr.mxu0 0.0
      %267 = vmatpush1.msra.mxu0 0.0
      %268 = vmatprep.subr.mxu0 0.0
      %269 = vmatpush1.msra.mxu0 0.0
      %270 = vmatprep.subr.mxu0 0.0
      %271 = vmatpush1.msra.mxu0 0.0
      %272 = vmatprep.subr.mxu0 0.0
      %273 = vmatpush1.msra.mxu0 0.0
      %274 = vmatprep.subr.mxu0 0.0
      %275 = vmatpush1.msra.mxu0 0.0
      %276 = vmatprep.subr.mxu0 0.0
      %277 = vmatpush1.msra.mxu0 0.0
      %278 = vmatprep.subr.mxu0 0.0
      %279 = vmatpush1.msra.mxu0 0.0
      %280 = vmatprep.subr.mxu0 0.0
      %281 = vmatpush1.msra.mxu0 0.0
      %282 = vmatprep.subr.mxu0 0.0
      %283 = vmatpush1.msra.mxu0 0.0
      %284 = vmatprep.subr.mxu0 0.0
      %285 = vmatpush1.msra.mxu0 0.0
      %286 = vmatprep.subr.mxu0 0.0
      %287 = vmatpush1.msra.mxu0 0.0
      %288 = vmatprep.subr.mxu0 0.0
      %289 = vmatpush1.msra.mxu0 %v79
      %290 = vmatprep.subr.mxu0 0.0
      %291 = vmatpush1.msra.mxu0 %v78
      %292 = vmatprep.subr.mxu0 0.0
      %293 = vmatpush2.msra.mxu0 0.0
      %294 = vmatprep.subr.mxu0 0.0
      %295 = vmatpush2.msra.mxu0 0.0
      %296 = vmatprep.subr.mxu0 0.0
      %297 = vmatpush2.msra.mxu0 0.0
      %298 = vmatprep.subr.mxu0 0.0
      %299 = vmatpush2.msra.mxu0 0.0
      %300 = vmatprep.subr.mxu0 0.0
      %301 = vmatpush2.msra.mxu0 0.0
      %302 = vmatprep.subr.mxu0 0.0
      %303 = vmatpush2.msra.mxu0 0.0
      %304 = vmatprep.subr.mxu0 0.0
      %305 = vmatpush2.msra.mxu0 0.0
      %306 = vmatprep.subr.mxu0 0.0
      %307 = vmatpush2.msra.mxu0 0.0
      %308 = vmatprep.subr.mxu0 0.0
      %309 = vmatpush2.msra.mxu0 0.0
      %310 = vmatprep.subr.mxu0 0.0
      %311 = vmatpush2.msra.mxu0 0.0
      %312 = vmatprep.subr.mxu0 0.0
      %313 = vmatpush2.msra.mxu0 0.0
      %314 = vmatprep.subr.mxu0 0.0
      %315 = vmatpush2.msra.mxu0 0.0
      %316 = vmatprep.subr.mxu0 0.0
      %317 = vmatpush2.msra.mxu0 0.0
      %318 = vmatprep.subr.mxu0 0.0
      %319 = vmatpush2.msra.mxu0 0.0
      %320 = vmatprep.subr.mxu0 0.0
      %321 = vmatpush2.msra.mxu0 0.0
      %322 = vmatprep.subr.mxu0 0.0
      %323 = vmatpush2.msra.mxu0 0.0
      %324 = vmatprep.mubr.f32.mxu0 0.0
      %325 = vmatmul.mubr.f32.gmra.mxu0 %v255
      %v326 = vpop.f32.mrf.mxu0
      %v327 = vadd.f32 0.0, %v326
      %v328 = vpop.f32.mrf.mxu0
      %329 = vmatprep.mubr.f32.mxu0 0.0
      %330 = vmatmul.mubr.f32.gmra.mxu0 %v258
      %v331 = vpop.f32.mrf.mxu0
      %v332 = vadd.f32 0.0, %v331
      %v333 = vpop.f32.mrf.mxu0
      %334 = vdwg.mxu0
      %335 = vmatprep.subr.mxu0 0.0
      %336 = vmatpush1.msra.mxu0 0.0
      %337 = vmatprep.subr.mxu0 0.0
      %338 = vmatpush1.msra.mxu0 0.0
      %339 = vmatprep.subr.mxu0 0.0
      %340 = vmatpush1.msra.mxu0 0.0
      %341 = vmatprep.subr.mxu0 0.0
      %342 = vmatpush1.msra.mxu0 0.0
      %343 = vmatprep.subr.mxu0 0.0
      %344 = vmatpush1.msra.mxu0 0.0
      %345 = vmatprep.subr.mxu0 0.0
      %346 = vmatpush1.msra.mxu0 0.0
      %347 = vmatprep.subr.mxu0 0.0
      %348 = vmatpush1.msra.mxu0 0.0
      %349 = vmatprep.subr.mxu0 0.0
      %350 = vmatpush1.msra.mxu0 0.0
      %351 = vmatprep.subr.mxu0 0.0
      %352 = vmatpush1.msra.mxu0 0.0
      %353 = vmatprep.subr.mxu0 0.0
      %354 = vmatpush1.msra.mxu0 0.0
      %355 = vmatprep.subr.mxu0 0.0
      %356 = vmatpush1.msra.mxu0 0.0
      %357 = vmatprep.subr.mxu0 0.0
      %358 = vmatpush1.msra.mxu0 0.0
      %359 = vmatprep.subr.mxu0 0.0
      %360 = vmatpush1.msra.mxu0 0.0
      %361 = vmatprep.subr.mxu0 0.0
      %362 = vmatpush1.msra.mxu0 0.0
      %363 = vmatprep.subr.mxu0 0.0
      %364 = vmatpush1.msra.mxu0 %v332
      %365 = vmatprep.subr.mxu0 0.0
      %366 = vmatpush1.msra.mxu0 %v327
      %367 = vmatprep.subr.mxu0 0.0
      %368 = vmatpush2.msra.mxu0 0.0
      %369 = vmatprep.subr.mxu0 0.0
      %370 = vmatpush2.msra.mxu0 0.0
      %371 = vmatprep.subr.mxu0 0.0
      %372 = vmatpush2.msra.mxu0 0.0
      %373 = vmatprep.subr.mxu0 0.0
      %374 = vmatpush2.msra.mxu0 0.0
      %375 = vmatprep.subr.mxu0 0.0
      %376 = vmatpush2.msra.mxu0 0.0
      %377 = vmatprep.subr.mxu0 0.0
      %378 = vmatpush2.msra.mxu0 0.0
      %379 = vmatprep.subr.mxu0 0.0
      %380 = vmatpush2.msra.mxu0 0.0
      %381 = vmatprep.subr.mxu0 0.0
      %382 = vmatpush2.msra.mxu0 0.0
      %383 = vmatprep.subr.mxu0 0.0
      %384 = vmatpush2.msra.mxu0 0.0
      %385 = vmatprep.subr.mxu0 0.0
      %386 = vmatpush2.msra.mxu0 0.0
      %387 = vmatprep.subr.mxu0 0.0
      %388 = vmatpush2.msra.mxu0 0.0
      %389 = vmatprep.subr.mxu0 0.0
      %390 = vmatpush2.msra.mxu0 0.0
      %391 = vmatprep.subr.mxu0 0.0
      %392 = vmatpush2.msra.mxu0 0.0
      %393 = vmatprep.subr.mxu0 0.0
      %394 = vmatpush2.msra.mxu0 0.0
      %395 = vmatprep.subr.mxu0 0.0
      %396 = vmatpush2.msra.mxu0 0.0
      %397 = vmatprep.subr.mxu0 0.0
      %398 = vmatpush2.msra.mxu0 0.0
      %399 = vmatprep.mubr.f32.mxu0 0.0
      %400 = vmatmul.mubr.f32.gmra.mxu0 %v167
      %v401 = vpop.f32.mrf.mxu0
      %v402 = vadd.f32 0.0, %v401
      %v403 = vpop.f32.mrf.mxu0
      %404 = vmatprep.mubr.f32.mxu0 0.0
      %405 = vmatmul.mubr.f32.gmra.mxu0 %v170
      %v406 = vpop.f32.mrf.mxu0
      %v407 = vadd.f32 0.0, %v406
      %v408 = vpop.f32.mrf.mxu0
      %409 = vdwg.mxu0
      %s410 = scalar_lea.vmem [#allocation7], %s250
      %411 = vst.msk [vmem:[%s410] sm:$0xff] %vm84, %v402
      %412 = vst.msk [vmem:[%s410 + $0x8] sm:$0xff] %vm84, %v407
      %s413 = sadd.s32 32, %s80
      %s414 = scalar_lea.vmem [#allocation4], %s413
      %v415 = vld [vmem:[%s414] sm:$0xff]
      %v416 = vld [vmem:[%s414 + $0x8] sm:$0xff]
      %v418 = vsel %vm84, %v415, 0
      %v421 = vsel %vm84, %v416, 0
      %423 = vmatprep.subr.mxu0 0.0
      %424 = vmatpush1.msra.mxu0 0.0
      %425 = vmatprep.subr.mxu0 0.0
      %426 = vmatpush1.msra.mxu0 0.0
      %427 = vmatprep.subr.mxu0 0.0
      %428 = vmatpush1.msra.mxu0 0.0
      %429 = vmatprep.subr.mxu0 0.0
      %430 = vmatpush1.msra.mxu0 0.0
      %431 = vmatprep.subr.mxu0 0.0
      %432 = vmatpush1.msra.mxu0 0.0
      %433 = vmatprep.subr.mxu0 0.0
      %434 = vmatpush1.msra.mxu0 0.0
      %435 = vmatprep.subr.mxu0 0.0
      %436 = vmatpush1.msra.mxu0 0.0
      %437 = vmatprep.subr.mxu0 0.0
      %438 = vmatpush1.msra.mxu0 0.0
      %439 = vmatprep.subr.mxu0 0.0
      %440 = vmatpush1.msra.mxu0 0.0
      %441 = vmatprep.subr.mxu0 0.0
      %442 = vmatpush1.msra.mxu0 0.0
      %443 = vmatprep.subr.mxu0 0.0
      %444 = vmatpush1.msra.mxu0 0.0
      %445 = vmatprep.subr.mxu0 0.0
      %446 = vmatpush1.msra.mxu0 0.0
      %447 = vmatprep.subr.mxu0 0.0
      %448 = vmatpush1.msra.mxu0 0.0
      %449 = vmatprep.subr.mxu0 0.0
      %450 = vmatpush1.msra.mxu0 0.0
      %451 = vmatprep.subr.mxu0 0.0
      %452 = vmatpush1.msra.mxu0 %v79
      %453 = vmatprep.subr.mxu0 0.0
      %454 = vmatpush1.msra.mxu0 %v78
      %455 = vmatprep.subr.mxu0 0.0
      %456 = vmatpush2.msra.mxu0 0.0
      %457 = vmatprep.subr.mxu0 0.0
      %458 = vmatpush2.msra.mxu0 0.0
      %459 = vmatprep.subr.mxu0 0.0
      %460 = vmatpush2.msra.mxu0 0.0
      %461 = vmatprep.subr.mxu0 0.0
      %462 = vmatpush2.msra.mxu0 0.0
      %463 = vmatprep.subr.mxu0 0.0
      %464 = vmatpush2.msra.mxu0 0.0
      %465 = vmatprep.subr.mxu0 0.0
      %466 = vmatpush2.msra.mxu0 0.0
      %467 = vmatprep.subr.mxu0 0.0
      %468 = vmatpush2.msra.mxu0 0.0
      %469 = vmatprep.subr.mxu0 0.0
      %470 = vmatpush2.msra.mxu0 0.0
      %471 = vmatprep.subr.mxu0 0.0
      %472 = vmatpush2.msra.mxu0 0.0
      %473 = vmatprep.subr.mxu0 0.0
      %474 = vmatpush2.msra.mxu0 0.0
      %475 = vmatprep.subr.mxu0 0.0
      %476 = vmatpush2.msra.mxu0 0.0
      %477 = vmatprep.subr.mxu0 0.0
      %478 = vmatpush2.msra.mxu0 0.0
      %479 = vmatprep.subr.mxu0 0.0
      %480 = vmatpush2.msra.mxu0 0.0
      %481 = vmatprep.subr.mxu0 0.0
      %482 = vmatpush2.msra.mxu0 0.0
      %483 = vmatprep.subr.mxu0 0.0
      %484 = vmatpush2.msra.mxu0 0.0
      %485 = vmatprep.subr.mxu0 0.0
      %486 = vmatpush2.msra.mxu0 0.0
      %487 = vmatprep.mubr.f32.mxu0 0.0
      %488 = vmatmul.mubr.f32.gmra.mxu0 %v418
      %v489 = vpop.f32.mrf.mxu0
      %v490 = vadd.f32 0.0, %v489
      %v491 = vpop.f32.mrf.mxu0
      %492 = vmatprep.mubr.f32.mxu0 0.0
      %493 = vmatmul.mubr.f32.gmra.mxu0 %v421
      %v494 = vpop.f32.mrf.mxu0
      %v495 = vadd.f32 0.0, %v494
      %v496 = vpop.f32.mrf.mxu0
      %497 = vdwg.mxu0
      %498 = vmatprep.subr.mxu0 0.0
      %499 = vmatpush1.msra.mxu0 0.0
      %500 = vmatprep.subr.mxu0 0.0
      %501 = vmatpush1.msra.mxu0 0.0
      %502 = vmatprep.subr.mxu0 0.0
      %503 = vmatpush1.msra.mxu0 0.0
      %504 = vmatprep.subr.mxu0 0.0
      %505 = vmatpush1.msra.mxu0 0.0
      %506 = vmatprep.subr.mxu0 0.0
      %507 = vmatpush1.msra.mxu0 0.0
      %508 = vmatprep.subr.mxu0 0.0
      %509 = vmatpush1.msra.mxu0 0.0
      %510 = vmatprep.subr.mxu0 0.0
      %511 = vmatpush1.msra.mxu0 0.0
      %512 = vmatprep.subr.mxu0 0.0
      %513 = vmatpush1.msra.mxu0 0.0
      %514 = vmatprep.subr.mxu0 0.0
      %515 = vmatpush1.msra.mxu0 0.0
      %516 = vmatprep.subr.mxu0 0.0
      %517 = vmatpush1.msra.mxu0 0.0
      %518 = vmatprep.subr.mxu0 0.0
      %519 = vmatpush1.msra.mxu0 0.0
      %520 = vmatprep.subr.mxu0 0.0
      %521 = vmatpush1.msra.mxu0 0.0
      %522 = vmatprep.subr.mxu0 0.0
      %523 = vmatpush1.msra.mxu0 0.0
      %524 = vmatprep.subr.mxu0 0.0
      %525 = vmatpush1.msra.mxu0 0.0
      %526 = vmatprep.subr.mxu0 0.0
      %527 = vmatpush1.msra.mxu0 %v495
      %528 = vmatprep.subr.mxu0 0.0
      %529 = vmatpush1.msra.mxu0 %v490
      %530 = vmatprep.subr.mxu0 0.0
      %531 = vmatpush2.msra.mxu0 0.0
      %532 = vmatprep.subr.mxu0 0.0
      %533 = vmatpush2.msra.mxu0 0.0
      %534 = vmatprep.subr.mxu0 0.0
      %535 = vmatpush2.msra.mxu0 0.0
      %536 = vmatprep.subr.mxu0 0.0
      %537 = vmatpush2.msra.mxu0 0.0
      %538 = vmatprep.subr.mxu0 0.0
      %539 = vmatpush2.msra.mxu0 0.0
      %540 = vmatprep.subr.mxu0 0.0
      %541 = vmatpush2.msra.mxu0 0.0
      %542 = vmatprep.subr.mxu0 0.0
      %543 = vmatpush2.msra.mxu0 0.0
      %544 = vmatprep.subr.mxu0 0.0
      %545 = vmatpush2.msra.mxu0 0.0
      %546 = vmatprep.subr.mxu0 0.0
      %547 = vmatpush2.msra.mxu0 0.0
      %548 = vmatprep.subr.mxu0 0.0
      %549 = vmatpush2.msra.mxu0 0.0
      %550 = vmatprep.subr.mxu0 0.0
      %551 = vmatpush2.msra.mxu0 0.0
      %552 = vmatprep.subr.mxu0 0.0
      %553 = vmatpush2.msra.mxu0 0.0
      %554 = vmatprep.subr.mxu0 0.0
      %555 = vmatpush2.msra.mxu0 0.0
      %556 = vmatprep.subr.mxu0 0.0
      %557 = vmatpush2.msra.mxu0 0.0
      %558 = vmatprep.subr.mxu0 0.0
      %559 = vmatpush2.msra.mxu0 0.0
      %560 = vmatprep.subr.mxu0 0.0
      %561 = vmatpush2.msra.mxu0 0.0
      %562 = vmatprep.mubr.f32.mxu0 0.0
      %563 = vmatmul.mubr.f32.gmra.mxu0 %v167
      %v564 = vpop.f32.mrf.mxu0
      %v565 = vadd.f32 0.0, %v564
      %v566 = vpop.f32.mrf.mxu0
      %567 = vmatprep.mubr.f32.mxu0 0.0
      %568 = vmatmul.mubr.f32.gmra.mxu0 %v170
      %v569 = vpop.f32.mrf.mxu0
      %v570 = vadd.f32 0.0, %v569
      %v571 = vpop.f32.mrf.mxu0
      %572 = vdwg.mxu0
      %s573 = scalar_lea.vmem [#allocation7], %s413
      %574 = vst.msk [vmem:[%s573] sm:$0xff] %vm84, %v565
      %575 = vst.msk [vmem:[%s573 + $0x8] sm:$0xff] %vm84, %v570
      %s576 = sadd.s32 48, %s80
      %s577 = scalar_lea.vmem [#allocation4], %s576
      %v578 = vld [vmem:[%s577] sm:$0xff]
      %v579 = vld [vmem:[%s577 + $0x8] sm:$0xff]
      %v581 = vsel %vm84, %v578, 0
      %v584 = vsel %vm84, %v579, 0
      %586 = vmatprep.subr.mxu0 0.0
      %587 = vmatpush1.msra.mxu0 0.0
      %588 = vmatprep.subr.mxu0 0.0
      %589 = vmatpush1.msra.mxu0 0.0
      %590 = vmatprep.subr.mxu0 0.0
      %591 = vmatpush1.msra.mxu0 0.0
      %592 = vmatprep.subr.mxu0 0.0
      %593 = vmatpush1.msra.mxu0 0.0
      %594 = vmatprep.subr.mxu0 0.0
      %595 = vmatpush1.msra.mxu0 0.0
      %596 = vmatprep.subr.mxu0 0.0
      %597 = vmatpush1.msra.mxu0 0.0
      %598 = vmatprep.subr.mxu0 0.0
      %599 = vmatpush1.msra.mxu0 0.0
      %600 = vmatprep.subr.mxu0 0.0
      %601 = vmatpush1.msra.mxu0 0.0
      %602 = vmatprep.subr.mxu0 0.0
      %603 = vmatpush1.msra.mxu0 0.0
      %604 = vmatprep.subr.mxu0 0.0
      %605 = vmatpush1.msra.mxu0 0.0
      %606 = vmatprep.subr.mxu0 0.0
      %607 = vmatpush1.msra.mxu0 0.0
      %608 = vmatprep.subr.mxu0 0.0
      %609 = vmatpush1.msra.mxu0 0.0
      %610 = vmatprep.subr.mxu0 0.0
      %611 = vmatpush1.msra.mxu0 0.0
      %612 = vmatprep.subr.mxu0 0.0
      %613 = vmatpush1.msra.mxu0 0.0
      %614 = vmatprep.subr.mxu0 0.0
      %615 = vmatpush1.msra.mxu0 %v79
      %616 = vmatprep.subr.mxu0 0.0
      %617 = vmatpush1.msra.mxu0 %v78
      %618 = vmatprep.subr.mxu0 0.0
      %619 = vmatpush2.msra.mxu0 0.0
      %620 = vmatprep.subr.mxu0 0.0
      %621 = vmatpush2.msra.mxu0 0.0
      %622 = vmatprep.subr.mxu0 0.0
      %623 = vmatpush2.msra.mxu0 0.0
      %624 = vmatprep.subr.mxu0 0.0
      %625 = vmatpush2.msra.mxu0 0.0
      %626 = vmatprep.subr.mxu0 0.0
      %627 = vmatpush2.msra.mxu0 0.0
      %628 = vmatprep.subr.mxu0 0.0
      %629 = vmatpush2.msra.mxu0 0.0
      %630 = vmatprep.subr.mxu0 0.0
      %631 = vmatpush2.msra.mxu0 0.0
      %632 = vmatprep.subr.mxu0 0.0
      %633 = vmatpush2.msra.mxu0 0.0
      %634 = vmatprep.subr.mxu0 0.0
      %635 = vmatpush2.msra.mxu0 0.0
      %636 = vmatprep.subr.mxu0 0.0
      %637 = vmatpush2.msra.mxu0 0.0
      %638 = vmatprep.subr.mxu0 0.0
      %639 = vmatpush2.msra.mxu0 0.0
      %640 = vmatprep.subr.mxu0 0.0
      %641 = vmatpush2.msra.mxu0 0.0
      %642 = vmatprep.subr.mxu0 0.0
      %643 = vmatpush2.msra.mxu0 0.0
      %644 = vmatprep.subr.mxu0 0.0
      %645 = vmatpush2.msra.mxu0 0.0
      %646 = vmatprep.subr.mxu0 0.0
      %647 = vmatpush2.msra.mxu0 0.0
      %648 = vmatprep.subr.mxu0 0.0
      %649 = vmatpush2.msra.mxu0 0.0
      %650 = vmatprep.mubr.f32.mxu0 0.0
      %651 = vmatmul.mubr.f32.gmra.mxu0 %v581
      %v652 = vpop.f32.mrf.mxu0
      %v653 = vadd.f32 0.0, %v652
      %v654 = vpop.f32.mrf.mxu0
      %655 = vmatprep.mubr.f32.mxu0 0.0
      %656 = vmatmul.mubr.f32.gmra.mxu0 %v584
      %v657 = vpop.f32.mrf.mxu0
      %v658 = vadd.f32 0.0, %v657
      %v659 = vpop.f32.mrf.mxu0
      %660 = vdwg.mxu0
      %661 = vmatprep.subr.mxu0 0.0
      %662 = vmatpush1.msra.mxu0 0.0
      %663 = vmatprep.subr.mxu0 0.0
      %664 = vmatpush1.msra.mxu0 0.0
      %665 = vmatprep.subr.mxu0 0.0
      %666 = vmatpush1.msra.mxu0 0.0
      %667 = vmatprep.subr.mxu0 0.0
      %668 = vmatpush1.msra.mxu0 0.0
      %669 = vmatprep.subr.mxu0 0.0
      %670 = vmatpush1.msra.mxu0 0.0
      %671 = vmatprep.subr.mxu0 0.0
      %672 = vmatpush1.msra.mxu0 0.0
      %673 = vmatprep.subr.mxu0 0.0
      %674 = vmatpush1.msra.mxu0 0.0
      %675 = vmatprep.subr.mxu0 0.0
      %676 = vmatpush1.msra.mxu0 0.0
      %677 = vmatprep.subr.mxu0 0.0
      %678 = vmatpush1.msra.mxu0 0.0
      %679 = vmatprep.subr.mxu0 0.0
      %680 = vmatpush1.msra.mxu0 0.0
      %681 = vmatprep.subr.mxu0 0.0
      %682 = vmatpush1.msra.mxu0 0.0
      %683 = vmatprep.subr.mxu0 0.0
      %684 = vmatpush1.msra.mxu0 0.0
      %685 = vmatprep.subr.mxu0 0.0
      %686 = vmatpush1.msra.mxu0 0.0
      %687 = vmatprep.subr.mxu0 0.0
      %688 = vmatpush1.msra.mxu0 0.0
      %689 = vmatprep.subr.mxu0 0.0
      %690 = vmatpush1.msra.mxu0 %v658
      %691 = vmatprep.subr.mxu0 0.0
      %692 = vmatpush1.msra.mxu0 %v653
      %693 = vmatprep.subr.mxu0 0.0
      %694 = vmatpush2.msra.mxu0 0.0
      %695 = vmatprep.subr.mxu0 0.0
      %696 = vmatpush2.msra.mxu0 0.0
      %697 = vmatprep.subr.mxu0 0.0
      %698 = vmatpush2.msra.mxu0 0.0
      %699 = vmatprep.subr.mxu0 0.0
      %700 = vmatpush2.msra.mxu0 0.0
      %701 = vmatprep.subr.mxu0 0.0
      %702 = vmatpush2.msra.mxu0 0.0
      %703 = vmatprep.subr.mxu0 0.0
      %704 = vmatpush2.msra.mxu0 0.0
      %705 = vmatprep.subr.mxu0 0.0
      %706 = vmatpush2.msra.mxu0 0.0
      %707 = vmatprep.subr.mxu0 0.0
      %708 = vmatpush2.msra.mxu0 0.0
      %709 = vmatprep.subr.mxu0 0.0
      %710 = vmatpush2.msra.mxu0 0.0
      %711 = vmatprep.subr.mxu0 0.0
      %712 = vmatpush2.msra.mxu0 0.0
      %713 = vmatprep.subr.mxu0 0.0
      %714 = vmatpush2.msra.mxu0 0.0
      %715 = vmatprep.subr.mxu0 0.0
      %716 = vmatpush2.msra.mxu0 0.0
      %717 = vmatprep.subr.mxu0 0.0
      %718 = vmatpush2.msra.mxu0 0.0
      %719 = vmatprep.subr.mxu0 0.0
      %720 = vmatpush2.msra.mxu0 0.0
      %721 = vmatprep.subr.mxu0 0.0
      %722 = vmatpush2.msra.mxu0 0.0
      %723 = vmatprep.subr.mxu0 0.0
      %724 = vmatpush2.msra.mxu0 0.0
      %725 = vmatprep.mubr.f32.mxu0 0.0
      %726 = vmatmul.mubr.f32.gmra.mxu0 %v167
      %v727 = vpop.f32.mrf.mxu0
      %v728 = vadd.f32 0.0, %v727
      %v729 = vpop.f32.mrf.mxu0
      %730 = vmatprep.mubr.f32.mxu0 0.0
      %731 = vmatmul.mubr.f32.gmra.mxu0 %v170
      %v732 = vpop.f32.mrf.mxu0
      %v733 = vadd.f32 0.0, %v732
      %v734 = vpop.f32.mrf.mxu0
      %735 = vdwg.mxu0
      %s736 = scalar_lea.vmem [#allocation7], %s576
      %737 = vst.msk [vmem:[%s736] sm:$0xff] %vm84, %v728
      %738 = vst.msk [vmem:[%s736 + $0x8] sm:$0xff] %vm84, %v733
    $region14: #{random_shifts_aug.1} parent=1 // loop_footer
      %s40 = sadd.s32 1, %s36
    $region15: #{random_shifts_aug.1} parent=1 // loop_footer_branch
      %35 = sbr.rel target = $region11
    $region16: #{random_shifts_aug.1} parent=1 // loop_exit
      _
    // Predicated region
    $region17: #{random_shifts_aug.1} parent=1 // pred_check
      _
    $region18: #{random_shifts_aug.1} parent=1 // pred_check_branch
      %740 = sbr.rel (0) target = $region20
    $region19: #{random_shifts_aug.1} parent=1 // pred_region
      %s742 = ssub.s32 2048, 2048
      %743 = vsyncadd [#allocation6], %s742
      %s744 = sshll.u32 [#allocation7], 4
      %s745 = int_to_ptr.vmem [resolvable:$true] %s744
      %750 = dma.vmem_to_hbm [thread:$0]  %s745, 2048, %s2, [#allocation6], 128, 128, 8
    $region20: #{random_shifts_aug.1} parent=1 // pred_fallthru
      _
    // Predicated region
    $region21: #{random_shifts_aug.1} parent=1 // pred_check
      _
    $region22: #{random_shifts_aug.1} parent=1 // pred_check_branch
      %752 = sbr.rel (0) target = $region24
    $region23: #{random_shifts_aug.1} parent=1 // pred_region
      %753 = dma.done [#allocation6], 2048
    $region24: #{random_shifts_aug.1} parent=1 // pred_fallthru
      _
    %754 = vsyncpa [#allocation5], 1
    %755 = vsyncpa [#allocation6], 1

</llo_original>
